<compile_context>
chip_gen: v5e
topology: v5e:2x2
jax: 0.10.0
libtpu: 0.0.40
codegen_flags: <defaults>
</compile_context>

<pallas_src>
import functools

import jax
import jax.numpy as jnp
from jax import lax
from jax.experimental import pallas as pl
from jax.experimental.pallas import tpu as pltpu

EPS = 1e-5  # nn.BatchNorm1d default eps


def _tap_shift(v, d):
    """v: (N, L, C) value.  Return v shifted by d along the L axis, zero-filled."""
    N, L, C = v.shape
    if d == 0:
        return v
    z = jnp.zeros((N, abs(d), C), v.dtype)
    if d < 0:
        return jnp.concatenate([z, v[:, : L + d, :]], axis=1)
    return jnp.concatenate([v[:, d:, :], z], axis=1)


def _im2col(v, K, P):
    """(N, L, C) -> (N*L, K*C): taps stacked along the matmul contraction dim."""
    N, L, C = v.shape
    cols = jnp.concatenate([_tap_shift(v, k - P) for k in range(K)], axis=-1)
    return cols.reshape(N * L, K * C)


def _batchnorm(y, g, b):
    """Training-mode BN over rows (N*L) per channel; single-pass variance, f32."""
    inv_m = 1.0 / y.shape[0]
    s = jnp.sum(y, axis=0, keepdims=True)
    ss = jnp.sum(y * y, axis=0, keepdims=True)
    mean = s * inv_m
    var = ss * inv_m - mean * mean
    return (y - mean) * lax.rsqrt(var + EPS) * g + b


def basic_block1d_kernel(x_ref, w1_ref, g1_ref, b1_ref, w2_ref, g2_ref,
                         b2_ref, out_ref, *, K, P, matmul_dtype):
    N, L, C = x_ref.shape
    x = x_ref[...].astype(jnp.float32)                 # (N, L, Cin), channels-last

    # ---- conv1: single MXU matmul, batch*length folded into M, taps in K ----
    a1 = _im2col(x, K, P).astype(matmul_dtype)         # (N*L, K*Cin)
    y1 = jnp.dot(a1, w1_ref[...], preferred_element_type=jnp.float32)  # (N*L, C) f32

    # ---- bn1 (batch stats) + relu ----
    h = jnp.maximum(_batchnorm(y1, g1_ref[...], b1_ref[...]), 0.0)

    # ---- conv2: same im2col trick on h, no padded VMEM scratch ----
    a2 = _im2col(h.reshape(N, L, C), K, P).astype(matmul_dtype)
    y2 = jnp.dot(a2, w2_ref[...], preferred_element_type=jnp.float32)

    # ---- bn2 + identity residual (kept f32) + relu ----
    o = _batchnorm(y2, g2_ref[...], b2_ref[...]) + x.reshape(N * L, C)
    out_ref[...] = jnp.maximum(o, 0.0).reshape(N, L, C).astype(out_ref.dtype)


def basic_block1d(x, params, kernel_size=3, matmul_dtype=jnp.float32):
    """x: (N, Cin, L) -- PyTorch NCL layout. Returns (N, Cout, L)."""
    w1, g1, b1, w2, g2, b2 = params
    N, Cin, L = x.shape
    Cout = w1.shape[0]
    assert Cin == Cout, "identity shortcut requires inplanes == planes"
    K = kernel_size
    P = (K - 1) // 2

    # NCL -> NLC so channels map to lanes / the matmul contraction.
    # TODO(synk): in a full backbone keep activations channels-last end-to-end
    # so this per-block transpose (and the inverse on the output) disappears.
    x_nlc = jnp.transpose(x, (0, 2, 1))

    # Conv weight (Cout, Cin, K) -> im2col form (K*Cin, Cout); row = k*Cin + ci.
    def prep_w(w):
        return jnp.transpose(w, (2, 1, 0)).reshape(K * Cin, Cout).astype(matmul_dtype)

    # TODO(synk): production sizes need a grid over N/L with BlockSpec
    # pipelining and two-phase (accumulate + finalize) BN statistics; the
    # un-gridded whole-array version below is correct only while everything
    # fits in VMEM.
    out_nlc = pl.pallas_call(
        functools.partial(basic_block1d_kernel, K=K, P=P,
                          matmul_dtype=matmul_dtype),
        out_shape=jax.ShapeDtypeStruct((N, L, Cout), x.dtype),
        in_specs=[pl.BlockSpec(memory_space=pltpu.MemorySpace.VMEM)] * 7,
        out_specs=pl.BlockSpec(memory_space=pltpu.MemorySpace.VMEM),
        compiler_params=pltpu.CompilerParams(vmem_limit_bytes=32 * 1024 * 1024),
    )(x_nlc, prep_w(w1), g1.reshape(1, -1), b1.reshape(1, -1),
      prep_w(w2), g2.reshape(1, -1), b2.reshape(1, -1))

    return jnp.transpose(out_nlc, (0, 2, 1))


def reference(x, params, kernel_size=3):
    """Pure-JAX reference mirroring the PyTorch forward (training-mode BN)."""
    w1, g1, b1, w2, g2, b2 = params
    P = (kernel_size - 1) // 2
    dn = ('NCH', 'OIH', 'NCH')

    def bn(y, g, b):
        m = jnp.mean(y, axis=(0, 2), keepdims=True)
        v = jnp.mean((y - m) ** 2, axis=(0, 2), keepdims=True)
        return (y - m) / jnp.sqrt(v + EPS) * g[None, :, None] + b[None, :, None]

    out = lax.conv_general_dilated(x, w1, (1,), [(P, P)], dimension_numbers=dn)
    out = jax.nn.relu(bn(out, g1, b1))
    out = lax.conv_general_dilated(out, w2, (1,), [(P, P)], dimension_numbers=dn)
    out = bn(out, g2, b2) + x
    return jax.nn.relu(out)


if __name__ == "__main__":
    N, C, L, K = 2, 8, 16, 3   # inplanes == planes == 8, stride=1, downsample=None

    key = jax.random.PRNGKey(0)
    kx, kw1, kw2, kg1, kb1, kg2, kb2 = jax.random.split(key, 7)

    x = jax.random.normal(kx, (N, C, L), dtype=jnp.float32)
    w1 = jax.random.normal(kw1, (C, C, K), dtype=jnp.float32) * 0.2  # conv1.weight
    w2 = jax.random.normal(kw2, (C, C, K), dtype=jnp.float32) * 0.2  # conv2.weight
    g1 = 1.0 + 0.1 * jax.random.normal(kg1, (C,), dtype=jnp.float32)  # bn1.weight
    b1 = 0.1 * jax.random.normal(kb1, (C,), dtype=jnp.float32)        # bn1.bias
    g2 = 1.0 + 0.1 * jax.random.normal(kg2, (C,), dtype=jnp.float32)  # bn2.weight
    b2 = 0.1 * jax.random.normal(kb2, (C,), dtype=jnp.float32)        # bn2.bias
    params = (w1, g1, b1, w2, g2, b2)

    ref = jax.block_until_ready(reference(x, params, kernel_size=K))

    # f32 matmul path: strict numerical parity with the PyTorch/f32 forward.
    out = jax.block_until_ready(basic_block1d(x, params, kernel_size=K))
    assert out.shape == (N, C, L)
    assert jnp.allclose(out, ref, atol=1e-4, rtol=1e-4), "f32 mismatch vs reference"

    # bf16 matmul-operand path (MXU-friendly); epilogue stays f32.
    out_bf16 = jax.block_until_ready(
        basic_block1d(x, params, kernel_size=K, matmul_dtype=jnp.bfloat16))
    assert jnp.allclose(out_bf16, ref, atol=1e-1, rtol=1e-1), "bf16 mismatch vs reference"

    # TODO(synk): stride>1 / downsample shortcut path not exercised (module default is None).
    print("KERNEL_OK")
</pallas_src>

<mosaic_0001>
module attributes {stable_mosaic.version = 11 : i64} {
  func.func @basic_block1d_kernel(%arg0: memref<2x16x8xf32, #tpu.memory_space<vmem>>, %arg1: memref<24x8xf32, #tpu.memory_space<vmem>>, %arg2: memref<1x8xf32, #tpu.memory_space<vmem>>, %arg3: memref<1x8xf32, #tpu.memory_space<vmem>>, %arg4: memref<24x8xf32, #tpu.memory_space<vmem>>, %arg5: memref<1x8xf32, #tpu.memory_space<vmem>>, %arg6: memref<1x8xf32, #tpu.memory_space<vmem>>, %arg7: memref<2x16x8xf32, #tpu.memory_space<vmem>>) attributes {dimension_semantics = [], scalar_prefetch = 0 : i64, scratch_operands = 0 : i64, tpu.core_type = #tpu.core_type<tc>} {
    %c0 = arith.constant 0 : index
    %c0_0 = arith.constant 0 : index
    %c0_1 = arith.constant 0 : index
    %0 = vector.load %arg0[%c0, %c0_0, %c0_1] : memref<2x16x8xf32, #tpu.memory_space<vmem>>, vector<2x16x8xf32>
    %cst = arith.constant 0.000000e+00 : f32
    %1 = vector.broadcast %cst : f32 to vector<2x1x8xf32>
    %2 = vector.extract_strided_slice %0 {offsets = [0, 0, 0], sizes = [2, 15, 8], strides = [1, 1, 1]} : vector<2x16x8xf32> to vector<2x15x8xf32>
    %3 = tpu.concatenate %1, %2 in 1 : vector<2x1x8xf32>, vector<2x15x8xf32> -> vector<2x16x8xf32>
    %cst_2 = arith.constant 0.000000e+00 : f32
    %4 = vector.broadcast %cst_2 : f32 to vector<2x1x8xf32>
    %5 = vector.extract_strided_slice %0 {offsets = [0, 1, 0], sizes = [2, 15, 8], strides = [1, 1, 1]} : vector<2x16x8xf32> to vector<2x15x8xf32>
    %6 = tpu.concatenate %5, %4 in 1 : vector<2x15x8xf32>, vector<2x1x8xf32> -> vector<2x16x8xf32>
    %7 = tpu.concatenate %3, %0, %6 in 2 : vector<2x16x8xf32>, vector<2x16x8xf32>, vector<2x16x8xf32> -> vector<2x16x24xf32>
    %8 = vector.shape_cast %7 : vector<2x16x24xf32> to vector<32x24xf32>
    %c0_3 = arith.constant 0 : index
    %c0_4 = arith.constant 0 : index
    %9 = vector.load %arg1[%c0_3, %c0_4] : memref<24x8xf32, #tpu.memory_space<vmem>>, vector<24x8xf32>
    %cst_5 = arith.constant dense<0.000000e+00> : vector<32x8xf32>
    %10 = tpu.matmul %8, %9, %cst_5 {dimension_numbers = #tpu.dot_dimension_numbers<[1], [0], [0], [1], [0, 0, 1, 1], [], []>} : vector<32x24xf32>, vector<24x8xf32>, vector<32x8xf32> -> vector<32x8xf32>
    %c0_6 = arith.constant 0 : index
    %c0_7 = arith.constant 0 : index
    %11 = vector.load %arg2[%c0_6, %c0_7] : memref<1x8xf32, #tpu.memory_space<vmem>>, vector<1x8xf32>
    %c0_8 = arith.constant 0 : index
    %c0_9 = arith.constant 0 : index
    %12 = vector.load %arg3[%c0_8, %c0_9] : memref<1x8xf32, #tpu.memory_space<vmem>>, vector<1x8xf32>
    %cst_10 = arith.constant dense<0.000000e+00> : vector<8xf32>
    %13 = vector.multi_reduction <add>, %10, %cst_10 [0] : vector<32x8xf32> to vector<8xf32>
    %14 = vector.shape_cast %13 : vector<8xf32> to vector<1x8xf32>
    %15 = arith.mulf %10, %10 : vector<32x8xf32>
    %cst_11 = arith.constant dense<0.000000e+00> : vector<8xf32>
    %16 = vector.multi_reduction <add>, %15, %cst_11 [0] : vector<32x8xf32> to vector<8xf32>
    %17 = vector.shape_cast %16 : vector<8xf32> to vector<1x8xf32>
    %cst_12 = arith.constant 3.125000e-02 : f32
    %18 = vector.broadcast %cst_12 : f32 to vector<1x8xf32>
    %19 = arith.mulf %14, %18 : vector<1x8xf32>
    %cst_13 = arith.constant 3.125000e-02 : f32
    %20 = vector.broadcast %cst_13 : f32 to vector<1x8xf32>
    %21 = arith.mulf %17, %20 : vector<1x8xf32>
    %22 = arith.mulf %19, %19 : vector<1x8xf32>
    %23 = arith.subf %21, %22 : vector<1x8xf32>
    %24 = vector.broadcast %19 : vector<1x8xf32> to vector<32x8xf32>
    %25 = arith.subf %10, %24 : vector<32x8xf32>
    %cst_14 = arith.constant 9.99999974E-6 : f32
    %26 = vector.broadcast %cst_14 : f32 to vector<1x8xf32>
    %27 = arith.addf %23, %26 : vector<1x8xf32>
    %28 = math.rsqrt %27 : vector<1x8xf32>
    %29 = vector.broadcast %28 : vector<1x8xf32> to vector<32x8xf32>
    %30 = arith.mulf %25, %29 : vector<32x8xf32>
    %31 = vector.broadcast %11 : vector<1x8xf32> to vector<32x8xf32>
    %32 = arith.mulf %30, %31 : vector<32x8xf32>
    %33 = vector.broadcast %12 : vector<1x8xf32> to vector<32x8xf32>
    %34 = arith.addf %32, %33 : vector<32x8xf32>
    %cst_15 = arith.constant 0.000000e+00 : f32
    %35 = vector.broadcast %cst_15 : f32 to vector<32x8xf32>
    %36 = arith.maximumf %34, %35 : vector<32x8xf32>
    %37 = vector.shape_cast %36 : vector<32x8xf32> to vector<2x16x8xf32>
    %cst_16 = arith.constant 0.000000e+00 : f32
    %38 = vector.broadcast %cst_16 : f32 to vector<2x1x8xf32>
    %39 = vector.extract_strided_slice %37 {offsets = [0, 0, 0], sizes = [2, 15, 8], strides = [1, 1, 1]} : vector<2x16x8xf32> to vector<2x15x8xf32>
    %40 = tpu.concatenate %38, %39 in 1 : vector<2x1x8xf32>, vector<2x15x8xf32> -> vector<2x16x8xf32>
    %cst_17 = arith.constant 0.000000e+00 : f32
    %41 = vector.broadcast %cst_17 : f32 to vector<2x1x8xf32>
    %42 = vector.extract_strided_slice %37 {offsets = [0, 1, 0], sizes = [2, 15, 8], strides = [1, 1, 1]} : vector<2x16x8xf32> to vector<2x15x8xf32>
    %43 = tpu.concatenate %42, %41 in 1 : vector<2x15x8xf32>, vector<2x1x8xf32> -> vector<2x16x8xf32>
    %44 = tpu.concatenate %40, %37, %43 in 2 : vector<2x16x8xf32>, vector<2x16x8xf32>, vector<2x16x8xf32> -> vector<2x16x24xf32>
    %45 = vector.shape_cast %44 : vector<2x16x24xf32> to vector<32x24xf32>
    %c0_18 = arith.constant 0 : index
    %c0_19 = arith.constant 0 : index
    %46 = vector.load %arg4[%c0_18, %c0_19] : memref<24x8xf32, #tpu.memory_space<vmem>>, vector<24x8xf32>
    %cst_20 = arith.constant dense<0.000000e+00> : vector<32x8xf32>
    %47 = tpu.matmul %45, %46, %cst_20 {dimension_numbers = #tpu.dot_dimension_numbers<[1], [0], [0], [1], [0, 0, 1, 1], [], []>} : vector<32x24xf32>, vector<24x8xf32>, vector<32x8xf32> -> vector<32x8xf32>
    %c0_21 = arith.constant 0 : index
    %c0_22 = arith.constant 0 : index
    %48 = vector.load %arg5[%c0_21, %c0_22] : memref<1x8xf32, #tpu.memory_space<vmem>>, vector<1x8xf32>
    %c0_23 = arith.constant 0 : index
    %c0_24 = arith.constant 0 : index
    %49 = vector.load %arg6[%c0_23, %c0_24] : memref<1x8xf32, #tpu.memory_space<vmem>>, vector<1x8xf32>
    %cst_25 = arith.constant dense<0.000000e+00> : vector<8xf32>
    %50 = vector.multi_reduction <add>, %47, %cst_25 [0] : vector<32x8xf32> to vector<8xf32>
    %51 = vector.shape_cast %50 : vector<8xf32> to vector<1x8xf32>
    %52 = arith.mulf %47, %47 : vector<32x8xf32>
    %cst_26 = arith.constant dense<0.000000e+00> : vector<8xf32>
    %53 = vector.multi_reduction <add>, %52, %cst_26 [0] : vector<32x8xf32> to vector<8xf32>
    %54 = vector.shape_cast %53 : vector<8xf32> to vector<1x8xf32>
    %cst_27 = arith.constant 3.125000e-02 : f32
    %55 = vector.broadcast %cst_27 : f32 to vector<1x8xf32>
    %56 = arith.mulf %51, %55 : vector<1x8xf32>
    %cst_28 = arith.constant 3.125000e-02 : f32
    %57 = vector.broadcast %cst_28 : f32 to vector<1x8xf32>
    %58 = arith.mulf %54, %57 : vector<1x8xf32>
    %59 = arith.mulf %56, %56 : vector<1x8xf32>
    %60 = arith.subf %58, %59 : vector<1x8xf32>
    %61 = vector.broadcast %56 : vector<1x8xf32> to vector<32x8xf32>
    %62 = arith.subf %47, %61 : vector<32x8xf32>
    %cst_29 = arith.constant 9.99999974E-6 : f32
    %63 = vector.broadcast %cst_29 : f32 to vector<1x8xf32>
    %64 = arith.addf %60, %63 : vector<1x8xf32>
    %65 = math.rsqrt %64 : vector<1x8xf32>
    %66 = vector.broadcast %65 : vector<1x8xf32> to vector<32x8xf32>
    %67 = arith.mulf %62, %66 : vector<32x8xf32>
    %68 = vector.broadcast %48 : vector<1x8xf32> to vector<32x8xf32>
    %69 = arith.mulf %67, %68 : vector<32x8xf32>
    %70 = vector.broadcast %49 : vector<1x8xf32> to vector<32x8xf32>
    %71 = arith.addf %69, %70 : vector<32x8xf32>
    %72 = vector.shape_cast %0 : vector<2x16x8xf32> to vector<32x8xf32>
    %73 = arith.addf %71, %72 : vector<32x8xf32>
    %cst_30 = arith.constant 0.000000e+00 : f32
    %74 = vector.broadcast %cst_30 : f32 to vector<32x8xf32>
    %75 = arith.maximumf %73, %74 : vector<32x8xf32>
    %76 = vector.shape_cast %75 : vector<32x8xf32> to vector<2x16x8xf32>
    %c0_31 = arith.constant 0 : index
    %c0_32 = arith.constant 0 : index
    %c0_33 = arith.constant 0 : index
    %77 = vector.load %arg7[%c0_31, %c0_32, %c0_33] : memref<2x16x8xf32, #tpu.memory_space<vmem>>, vector<2x16x8xf32>
    tpu.vector_store %arg7[%c0_31, %c0_32, %c0_33], %76 {strides = array<i32>} : memref<2x16x8xf32, #tpu.memory_space<vmem>>, vector<2x16x8xf32>,
    return
  }
}

</mosaic_0001>

<llo_original>
// kernel: tpu_custom_call.1
$region0: #{tpu_custom_call.1}
  #allocation0 [shape = 'u32[]', space=smem, size = 0x4, offset = 0x4, fixed_abs, tag = 'smem constant byte address 0x4 - core index']
  #allocation1 [shape = 'u32[72,128]{1,0:T(1,128)}', space=vmem, size = 0x9000, scoped, tag = 'internal scratch']
  %s0 = inlined_call_operand.vmem [shape: f32[2,16,8], index: 0, kind: input, shape index: {}]
  %s1 = inlined_call_operand.vmem [shape: f32[24,8], index: 1, kind: input, shape index: {}]
  %s2 = inlined_call_operand.vmem [shape: f32[1,8], index: 2, kind: input, shape index: {}]
  %s3 = inlined_call_operand.vmem [shape: f32[1,8], index: 3, kind: input, shape index: {}]
  %s4 = inlined_call_operand.vmem [shape: f32[24,8], index: 4, kind: input, shape index: {}]
  %s5 = inlined_call_operand.vmem [shape: f32[1,8], index: 5, kind: input, shape index: {}]
  %s6 = inlined_call_operand.vmem [shape: f32[1,8], index: 6, kind: input, shape index: {}]
  %s7 = inlined_call_operand.vmem [shape: f32[2,16,8], index: 7, kind: output, shape index: {}]
  %s8 = sld [smem:[#allocation0]]
  $region38: #{tpu_custom_call.1} parent=0
    _
  %s10 = ssub.s32 1, %s8
  %s11 = scalar_select 0, %s10, %s8
  // Predicated region
  $region2: #{tpu_custom_call.1} parent=0 // pred_check
    _
  $region3: #{tpu_custom_call.1} parent=0 // pred_check_branch
    %13 = sbr.rel (0) target = $region5
  $region4: #{tpu_custom_call.1} parent=0 // pred_region
    _
  $region5: #{tpu_custom_call.1} parent=0 // pred_fallthru
    _
  // Predicated region
  $region6: #{tpu_custom_call.1} parent=0 // pred_check
    _
  $region7: #{tpu_custom_call.1} parent=0 // pred_check_branch
    %15 = sbr.rel (0) target = $region9
  $region8: #{tpu_custom_call.1} parent=0 // pred_region
    _
  $region9: #{tpu_custom_call.1} parent=0 // pred_fallthru
    _
  // Predicated region
  $region10: #{tpu_custom_call.1} parent=0 // pred_check
    _
  $region11: #{tpu_custom_call.1} parent=0 // pred_check_branch
    %17 = sbr.rel (0) target = $region13
  $region12: #{tpu_custom_call.1} parent=0 // pred_region
    _
  $region13: #{tpu_custom_call.1} parent=0 // pred_fallthru
    _
  // Predicated region
  $region14: #{tpu_custom_call.1} parent=0 // pred_check
    _
  $region15: #{tpu_custom_call.1} parent=0 // pred_check_branch
    %19 = sbr.rel (0) target = $region17
  $region16: #{tpu_custom_call.1} parent=0 // pred_region
    _
  $region17: #{tpu_custom_call.1} parent=0 // pred_fallthru
    _
  // Predicated region
  $region18: #{tpu_custom_call.1} parent=0 // pred_check
    _
  $region19: #{tpu_custom_call.1} parent=0 // pred_check_branch
    %21 = sbr.rel (0) target = $region21
  $region20: #{tpu_custom_call.1} parent=0 // pred_region
    _
  $region21: #{tpu_custom_call.1} parent=0 // pred_fallthru
    _
  // Predicated region
  $region22: #{tpu_custom_call.1} parent=0 // pred_check
    _
  $region23: #{tpu_custom_call.1} parent=0 // pred_check_branch
    %23 = sbr.rel (0) target = $region25
  $region24: #{tpu_custom_call.1} parent=0 // pred_region
    _
  $region25: #{tpu_custom_call.1} parent=0 // pred_fallthru
    _
  // Predicated region
  $region26: #{tpu_custom_call.1} parent=0 // pred_check
    _
  $region27: #{tpu_custom_call.1} parent=0 // pred_check_branch
    %25 = sbr.rel (0) target = $region29
  $region28: #{tpu_custom_call.1} parent=0 // pred_region
    _
  $region29: #{tpu_custom_call.1} parent=0 // pred_fallthru
    _
  %v26 = vld [vmem:[%s0] sm:$0xff]
  %v27 = vld [vmem:[%s0 + $0x8] sm:$0xff]
  %v28 = vld [vmem:[%s0 + $0x10] sm:$0xff]
  %v29 = vld [vmem:[%s0 + $0x18] sm:$0xff]
  %vm34 = vcmask 1040384
  %v35 = vrot.slane %v26, 7
  %v36 = vrot.slane %v27, 7
  %v37 = vsel %vm34, %v35, %v36
  %v38 = vrot.slane %v28, 7
  %v39 = vrot.slane %v29, 7
  %v40 = vsel %vm34, %v38, %v39
  %v45 = vsel %vm34, 0.0, %v35
  %v46 = vsel %vm34, 0.0, %v38
  %vm47 = vcmask 1046528
  %v48 = vrot.slane %v26, 1
  %v49 = vrot.slane %v27, 1
  %v50 = vsel %vm47, %v48, %v49
  %v51 = vrot.slane %v28, 1
  %v52 = vrot.slane %v29, 1
  %v53 = vsel %vm47, %v51, %v52
  %v56 = vsel %vm47, %v49, 0.0
  %v57 = vsel %vm47, %v52, 0.0
  %58 = vrot.lane.b32.xlu0 %v26, 8
  %v59 = vpop.permute.xlu0 %58
  %60 = vrot.lane.b32.xlu0 %v27, 8
  %v61 = vpop.permute.xlu0 %60
  %62 = vrot.lane.b32.xlu0 %v28, 8
  %v63 = vpop.permute.xlu0 %62
  %64 = vrot.lane.b32.xlu0 %v29, 8
  %v65 = vpop.permute.xlu0 %64
  %72 = vrot.lane.b32.xlu0 %v50, 16
  %v73 = vpop.permute.xlu0 %72
  %74 = vrot.lane.b32.xlu0 %v56, 16
  %v75 = vpop.permute.xlu0 %74
  %76 = vrot.lane.b32.xlu0 %v53, 16
  %v77 = vpop.permute.xlu0 %76
  %78 = vrot.lane.b32.xlu0 %v57, 16
  %v79 = vpop.permute.xlu0 %78
  %vm84 = vcmask 64512
  %v85 = vsel %vm84, %v45, %v59
  %v86 = vsel %vm84, %v37, %v61
  %v87 = vsel %vm84, %v46, %v63
  %v88 = vsel %vm84, %v40, %v65
  %vm89 = vcmask 130048
  %v90 = vsel %vm89, %v85, %v73
  %v91 = vsel %vm89, %v86, %v75
  %v92 = vsel %vm89, %v87, %v77
  %v93 = vsel %vm89, %v88, %v79
  %v94 = vld [vmem:[%s1] sm:$0xff]
  %v95 = vld [vmem:[%s1 + $0x8] sm:$0xff]
  %v96 = vld [vmem:[%s1 + $0x10] sm:$0xff]
  %vm97 = vcmask 195584
  %v99 = vsel %vm97, %v90, 0
  %v102 = vsel %vm97, %v91, 0
  %v105 = vsel %vm97, %v92, 0
  %v108 = vsel %vm97, %v93, 0
  %110 = vmatpush.msra.mxu0 0.0
  %111 = vmatpush.msra.mxu0 0.0
  %112 = vmatpush.msra.mxu0 0.0
  %113 = vmatpush.msra.mxu0 0.0
  %114 = vmatpush.msra.mxu0 0.0
  %115 = vmatpush.msra.mxu0 0.0
  %116 = vmatpush.msra.mxu0 0.0
  %117 = vmatpush.msra.mxu0 0.0
  %118 = vmatpush.msra.mxu0 0.0
  %119 = vmatpush.msra.mxu0 0.0
  %120 = vmatpush.msra.mxu0 0.0
  %121 = vmatpush.msra.mxu0 0.0
  %122 = vmatpush.msra.mxu0 0.0
  %123 = vmatpush.msra.mxu0 %v96
  %124 = vmatpush.msra.mxu0 %v95
  %125 = vmatpush.msra.mxu0 %v94
  %126 = vmatmul.f32.gmra.mxu0 %v99
  %v127 = vpop.f32.mrf.mxu0
  %v128 = vadd.f32 0.0, %v127
  %129 = vmatmul.f32.gmra.mxu0 %v102
  %v130 = vpop.f32.mrf.mxu0
  %v131 = vadd.f32 0.0, %v130
  %132 = vmatmul.f32.gmra.mxu0 %v105
  %v133 = vpop.f32.mrf.mxu0
  %v134 = vadd.f32 0.0, %v133
  %135 = vmatmul.f32.gmra.mxu0 %v108
  %v136 = vpop.f32.mrf.mxu0
  %v137 = vadd.f32 0.0, %v136
  %138 = vdwg.mxu0
  %v139 = vld [vmem:[%s2] sm:$0x1]
  %v140 = vld [vmem:[%s3] sm:$0x1]
  %v141 = vsel %vm84, %v128, 0.0
  %v142 = vsel %vm84, %v131, 0.0
  %v143 = vadd.f32 %v141, %v142
  %v144 = vsel %vm84, %v134, 0.0
  %v145 = vadd.f32 %v143, %v144
  %v146 = vsel %vm84, %v137, 0.0
  %v147 = vadd.f32 %v145, %v146
  %v148 = vrot.slane %v147, 4
  %v149 = vadd.f32 %v147, %v148
  %v150 = vrot.slane %v149, 2
  %v151 = vadd.f32 %v149, %v150
  %v152 = vrot.slane %v151, 1
  %v153 = vadd.f32 %v151, %v152
  %v154 = vmul.f32 %v128, %v128
  %v155 = vmul.f32 %v131, %v131
  %v156 = vmul.f32 %v134, %v134
  %v157 = vmul.f32 %v137, %v137
  %v158 = vsel %vm84, %v154, 0.0
  %v159 = vsel %vm84, %v155, 0.0
  %v160 = vadd.f32 %v158, %v159
  %v161 = vsel %vm84, %v156, 0.0
  %v162 = vadd.f32 %v160, %v161
  %v163 = vsel %vm84, %v157, 0.0
  %v164 = vadd.f32 %v162, %v163
  %v165 = vrot.slane %v164, 4
  %v166 = vadd.f32 %v164, %v165
  %v167 = vrot.slane %v166, 2
  %v168 = vadd.f32 %v166, %v167
  %v169 = vrot.slane %v168, 1
  %v170 = vadd.f32 %v168, %v169
  %v171 = vmul.f32 %v153, 0.03125
  %v172 = vmul.f32 %v170, 0.03125
  %v173 = vmul.f32 %v171, %v171
  %v174 = vsub.f32 %v172, %v173
  %v175 = vsub.f32 %v128, %v171
  %v176 = vsub.f32 %v131, %v171
  %v177 = vsub.f32 %v134, %v171
  %v178 = vsub.f32 %v137, %v171
  %v179 = vadd.f32 %v174, 1e-05
  %v180 = vrsqrt.pop %v179
  %v181 = vmul.f32 %v180, %v179
  %v182 = vmul.f32 %v181, %v180
  %v183 = vmul.f32 0.5, %v182
  %v184 = vsub.f32 1.5, %v183
  %v185 = vmul.f32 %v180, %v184
  %vm186 = vweird.f32 %v179
  %vm187 = vweird.f32 %v180
  %vm188 = vmor %vm186, %vm187
  %v189 = vsel %vm188, %v180, %v185
  %v190 = vmul.f32 %v175, %v189
  %v191 = vmul.f32 %v176, %v189
  %v192 = vmul.f32 %v177, %v189
  %v193 = vmul.f32 %v178, %v189
  %v195 = vperm.slane %v139, 0
  %v197 = vmul.f32 %v190, %v195
  %v198 = vmul.f32 %v191, %v195
  %v199 = vmul.f32 %v192, %v195
  %v200 = vmul.f32 %v193, %v195
  %v202 = vperm.slane %v140, 0
  %v204 = vadd.f32 %v197, %v202
  %v205 = vadd.f32 %v198, %v202
  %v206 = vadd.f32 %v199, %v202
  %v207 = vadd.f32 %v200, %v202
  %v208 = vmax.f32 %v204, 0.0
  %v209 = vmax.f32 %v205, 0.0
  %v210 = vmax.f32 %v206, 0.0
  %v211 = vmax.f32 %v207, 0.0
  %v216 = vrot.slane %v208, 7
  %v217 = vrot.slane %v209, 7
  %v218 = vsel %vm34, %v216, %v217
  %v219 = vrot.slane %v210, 7
  %v220 = vrot.slane %v211, 7
  %v221 = vsel %vm34, %v219, %v220
  %v226 = vsel %vm34, 0.0, %v216
  %v227 = vsel %vm34, 0.0, %v219
  %v228 = vrot.slane %v208, 1
  %v229 = vrot.slane %v209, 1
  %v230 = vsel %vm47, %v228, %v229
  %v231 = vrot.slane %v210, 1
  %v232 = vrot.slane %v211, 1
  %v233 = vsel %vm47, %v231, %v232
  %v236 = vsel %vm47, %v229, 0.0
  %v237 = vsel %vm47, %v232, 0.0
  %238 = vrot.lane.b32.xlu0 %v208, 8
  %v239 = vpop.permute.xlu0 %238
  %240 = vrot.lane.b32.xlu0 %v209, 8
  %v241 = vpop.permute.xlu0 %240
  %242 = vrot.lane.b32.xlu0 %v210, 8
  %v243 = vpop.permute.xlu0 %242
  %244 = vrot.lane.b32.xlu0 %v211, 8
  %v245 = vpop.permute.xlu0 %244
  %252 = vrot.lane.b32.xlu0 %v230, 16
  %v253 = vpop.permute.xlu0 %252
  %254 = vrot.lane.b32.xlu0 %v236, 16
  %v255 = vpop.permute.xlu0 %254
  %256 = vrot.lane.b32.xlu0 %v233, 16
  %v257 = vpop.permute.xlu0 %256
  %258 = vrot.lane.b32.xlu0 %v237, 16
  %v259 = vpop.permute.xlu0 %258
  %v264 = vsel %vm84, %v226, %v239
  %v265 = vsel %vm84, %v218, %v241
  %v266 = vsel %vm84, %v227, %v243
  %v267 = vsel %vm84, %v221, %v245
  %v268 = vsel %vm89, %v264, %v253
  %v269 = vsel %vm89, %v265, %v255
  %v270 = vsel %vm89, %v266, %v257
  %v271 = vsel %vm89, %v267, %v259
  %v272 = vld [vmem:[%s4] sm:$0xff]
  %v273 = vld [vmem:[%s4 + $0x8] sm:$0xff]
  %v274 = vld [vmem:[%s4 + $0x10] sm:$0xff]
  %v276 = vsel %vm97, %v268, 0
  %v279 = vsel %vm97, %v269, 0
  %v282 = vsel %vm97, %v270, 0
  %v285 = vsel %vm97, %v271, 0
  %287 = vmatpush.msra.mxu0 0.0
  %288 = vmatpush.msra.mxu0 0.0
  %289 = vmatpush.msra.mxu0 0.0
  %290 = vmatpush.msra.mxu0 0.0
  %291 = vmatpush.msra.mxu0 0.0
  %292 = vmatpush.msra.mxu0 0.0
  %293 = vmatpush.msra.mxu0 0.0
  %294 = vmatpush.msra.mxu0 0.0
  %295 = vmatpush.msra.mxu0 0.0
  %296 = vmatpush.msra.mxu0 0.0
  %297 = vmatpush.msra.mxu0 0.0
  %298 = vmatpush.msra.mxu0 0.0
  %299 = vmatpush.msra.mxu0 0.0
  %300 = vmatpush.msra.mxu0 %v274
  %301 = vmatpush.msra.mxu0 %v273
  %302 = vmatpush.msra.mxu0 %v272
  %303 = vmatmul.f32.gmra.mxu0 %v276
  %v304 = vpop.f32.mrf.mxu0
  %v305 = vadd.f32 0.0, %v304
  %306 = vmatmul.f32.gmra.mxu0 %v279
  %v307 = vpop.f32.mrf.mxu0
  %v308 = vadd.f32 0.0, %v307
  %309 = vmatmul.f32.gmra.mxu0 %v282
  %v310 = vpop.f32.mrf.mxu0
  %v311 = vadd.f32 0.0, %v310
  %312 = vmatmul.f32.gmra.mxu0 %v285
  %v313 = vpop.f32.mrf.mxu0
  %v314 = vadd.f32 0.0, %v313
  %315 = vdwg.mxu0
  %v316 = vld [vmem:[%s5] sm:$0x1]
  %v317 = vld [vmem:[%s6] sm:$0x1]
  %v318 = vsel %vm84, %v305, 0.0
  %v319 = vsel %vm84, %v308, 0.0
  %v320 = vadd.f32 %v318, %v319
  %v321 = vsel %vm84, %v311, 0.0
  %v322 = vadd.f32 %v320, %v321
  %v323 = vsel %vm84, %v314, 0.0
  %v324 = vadd.f32 %v322, %v323
  %v325 = vrot.slane %v324, 4
  %v326 = vadd.f32 %v324, %v325
  %v327 = vrot.slane %v326, 2
  %v328 = vadd.f32 %v326, %v327
  %v329 = vrot.slane %v328, 1
  %v330 = vadd.f32 %v328, %v329
  %v331 = vmul.f32 %v305, %v305
  %v332 = vmul.f32 %v308, %v308
  %v333 = vmul.f32 %v311, %v311
  %v334 = vmul.f32 %v314, %v314
  %v335 = vsel %vm84, %v331, 0.0
  %v336 = vsel %vm84, %v332, 0.0
  %v337 = vadd.f32 %v335, %v336
  %v338 = vsel %vm84, %v333, 0.0
  %v339 = vadd.f32 %v337, %v338
  %v340 = vsel %vm84, %v334, 0.0
  %v341 = vadd.f32 %v339, %v340
  %v342 = vrot.slane %v341, 4
  %v343 = vadd.f32 %v341, %v342
  %v344 = vrot.slane %v343, 2
  %v345 = vadd.f32 %v343, %v344
  %v346 = vrot.slane %v345, 1
  %v347 = vadd.f32 %v345, %v346
  %v348 = vmul.f32 %v330, 0.03125
  %v349 = vmul.f32 %v347, 0.03125
  %v350 = vmul.f32 %v348, %v348
  %v351 = vsub.f32 %v349, %v350
  %v352 = vsub.f32 %v305, %v348
  %v353 = vsub.f32 %v308, %v348
  %v354 = vsub.f32 %v311, %v348
  %v355 = vsub.f32 %v314, %v348
  %v356 = vadd.f32 %v351, 1e-05
  %v357 = vrsqrt.pop %v356
  %v358 = vmul.f32 %v357, %v356
  %v359 = vmul.f32 %v358, %v357
  %v360 = vmul.f32 0.5, %v359
  %v361 = vsub.f32 1.5, %v360
  %v362 = vmul.f32 %v357, %v361
  %vm363 = vweird.f32 %v356
  %vm364 = vweird.f32 %v357
  %vm365 = vmor %vm363, %vm364
  %v366 = vsel %vm365, %v357, %v362
  %v367 = vmul.f32 %v352, %v366
  %v368 = vmul.f32 %v353, %v366
  %v369 = vmul.f32 %v354, %v366
  %v370 = vmul.f32 %v355, %v366
  %v372 = vperm.slane %v316, 0
  %v374 = vmul.f32 %v367, %v372
  %v375 = vmul.f32 %v368, %v372
  %v376 = vmul.f32 %v369, %v372
  %v377 = vmul.f32 %v370, %v372
  %v379 = vperm.slane %v317, 0
  %v381 = vadd.f32 %v374, %v379
  %v382 = vadd.f32 %v375, %v379
  %v383 = vadd.f32 %v376, %v379
  %v384 = vadd.f32 %v377, %v379
  %v385 = vadd.f32 %v381, %v26
  %v386 = vadd.f32 %v382, %v27
  %v387 = vadd.f32 %v383, %v28
  %v388 = vadd.f32 %v384, %v29
  %v389 = vmax.f32 %v385, 0.0
  %v390 = vmax.f32 %v386, 0.0
  %v391 = vmax.f32 %v387, 0.0
  %v392 = vmax.f32 %v388, 0.0
  %393 = vst.msk [vmem:[%s7] sm:$0xff] %vm84, %v389
  %394 = vst.msk [vmem:[%s7 + $0x8] sm:$0xff] %vm84, %v390
  %395 = vst.msk [vmem:[%s7 + $0x10] sm:$0xff] %vm84, %v391
  %396 = vst.msk [vmem:[%s7 + $0x18] sm:$0xff] %vm84, %v392
  // Predicated region
  $region30: #{tpu_custom_call.1} parent=0 // pred_check
    _
  $region31: #{tpu_custom_call.1} parent=0 // pred_check_branch
    %398 = sbr.rel (0) target = $region33
  $region32: #{tpu_custom_call.1} parent=0 // pred_region
    _
  $region33: #{tpu_custom_call.1} parent=0 // pred_fallthru
    _
  // Predicated region
  $region34: #{tpu_custom_call.1} parent=0 // pred_check
    _
  $region35: #{tpu_custom_call.1} parent=0 // pred_check_branch
    %400 = sbr.rel (0) target = $region37
  $region36: #{tpu_custom_call.1} parent=0 // pred_region
    _
  $region37: #{tpu_custom_call.1} parent=0 // pred_fallthru
    _

</llo_original>
